<compile_context>
chip_gen: v7x
topology: tpu7x:2x2x1
jax: 0.10.0
libtpu: 0.0.40
codegen_flags: <defaults>
</compile_context>

<pallas_src>
from functools import partial

import jax
import jax.numpy as jnp
from jax.experimental import pallas as pl
from jax.experimental.pallas import tpu as pltpu


_LANE = 128
_SUBLANE = 8
# Per-grid-step HBM traffic target: big enough that the ~0.35 us fixed per-step pipeline
# overhead is <10-15% of the step's DMA time on every generation (incl. v7x's 3.2 TB/s).
_DEFAULT_STEP_BYTES = 8 * 1024 * 1024
# Upper bound on tile-related VMEM (double-buffered in/out + kernel temporaries): safe on
# v7x's 64 MiB per-TC VMEM with headroom; v5e/v6e (128 MiB) trivially fit.
_TILE_VMEM_BUDGET = 36 * 1024 * 1024
# MXU path: batch rows unrolled per grid step (static unroll -> keep small).
_MXU_MAX_BATCH_TILE = 8


def _round_up(a: int, b: int) -> int:
    return (a + b - 1) // b * b


def _cdiv(a: int, b: int) -> int:
    return (a + b - 1) // b


def _make_kernel(c_in: int, b_t: int, use_vpu: bool):
    if use_vpu:
        # Tiny contraction dim: skip the MXU, do C_in broadcast-FMAs on the VPU.
        def kernel(w_ref, x_ref, o_ref):
            # w_ref: (C_out, C_in); x_ref: (B_T, C_in, T_L); o_ref: (B_T, C_out, T_L)
            w = w_ref[...]
            # Slices load straight from the pipeline input buffer (no full-tile copy,
            # no zero-initialized accumulator).
            acc = w[None, :, 0:1] * x_ref[:, 0:1, :]
            for c in range(1, c_in):
                acc = acc + w[None, :, c:c + 1] * x_ref[:, c:c + 1, :]
            o_ref[...] = acc.astype(o_ref.dtype)
    else:
        # Production channel counts: MXU matmul with f32 accumulation, statically
        # unrolled over the (small) batch tile.
        def kernel(w_ref, x_ref, o_ref):
            w = w_ref[...]
            for b in range(b_t):
                o_ref[b] = jnp.dot(
                    w, x_ref[b], preferred_element_type=jnp.float32
                ).astype(o_ref.dtype)
    return kernel


def _choose_tiles(N, C_in, C_out, L, use_vpu, step_bytes):
    """Pick (batch_tile, length_tile, vmem_needed_bytes) for a near-roofline DMA stream."""
    ci8 = _round_up(C_in, _SUBLANE)
    co8 = _round_up(C_out, _SUBLANE)
    # Per "lane column" of a step: real HBM bytes, and VMEM bytes including the
    # double-buffered pipeline tiles plus ~2 kernel-internal f32 output temporaries
    # and one input-row temporary (Mosaic materializes large elementwise intermediates).
    col_hbm = (C_in + C_out) * 4
    col_vmem = (2 * (ci8 + co8) + 2 * co8 + ci8) * 4

    cols = max(_LANE, (step_bytes // col_hbm) // _LANE * _LANE)
    cols = min(cols, max(_LANE, (_TILE_VMEM_BUDGET // col_vmem) // _LANE * _LANE))

    if L >= cols:
        # Tile the length axis; one batch element per step.
        b_t, t_l = 1, cols
        if N == 1:
            # v7x: guarantee >= 2 grid steps so both TensorCores get work.
            t_l = min(t_l, _round_up(_cdiv(L, 2), _LANE))
    else:
        # Whole length per step; gang batch rows to reach the byte target.
        t_l = L
        b_t = min(N, max(1, cols // _round_up(L, _LANE)))
        if not use_vpu:
            b_t = min(b_t, _MXU_MAX_BATCH_TILE)

    vmem_needed = (2 * co8 * _round_up(C_in, _LANE) * 4          # resident weight (x2 bufs)
                   + col_vmem * b_t * _round_up(t_l, _LANE))      # tiles + temporaries
    return b_t, t_l, vmem_needed


@partial(jax.jit, static_argnames=("step_bytes",))
def zero_conv_block(x, weight, *, step_bytes=_DEFAULT_STEP_BYTES):
    """1x1 Conv1d, bias=False (ZeroConvBlock.forward).

    x:      (N, C_in, L)  float32, PyTorch NCL layout
    weight: (C_out, C_in) or (C_out, C_in, 1)  (PyTorch Conv1d weight, kernel_size=1)
    returns (N, C_out, L)
    """
    if weight.ndim == 3:
        weight = weight[..., 0]
    N, C_in, L = x.shape
    C_out = weight.shape[0]

    use_vpu = C_in <= 16  # tiny contraction -> VPU FMAs; otherwise MXU
    B_T, T_L, vmem_needed = _choose_tiles(N, C_in, C_out, L, use_vpu, step_bytes)
    grid = (_cdiv(N, B_T), _cdiv(L, T_L))

    # Scoped-VMEM limit derived from actual need (+ headroom), capped well under v7x's
    # 64 MiB physical VMEM; also overrides v5e's small 16 MiB scoped default.
    vmem_limit = min(max(vmem_needed + (16 << 20), 32 << 20), 56 << 20)
    # TODO(synk): if the weight itself approaches VMEM size (C_out*C_in*4B >~ 8-16 MiB),
    # add a C_out grid axis instead of keeping the whole weight resident.

    # Accurate traffic estimate: no wrapper copies, no padded writeback (edge DMAs clip).
    cost = pl.CostEstimate(
        flops=2 * N * L * C_in * C_out,
        transcendentals=0,
        bytes_accessed=(x.size + weight.size + N * C_out * L) * 4,
    )

    return pl.pallas_call(
        _make_kernel(C_in, B_T, use_vpu),
        out_shape=jax.ShapeDtypeStruct((N, C_out, L), x.dtype),
        grid_spec=pltpu.PrefetchScalarGridSpec(
            num_scalar_prefetch=0,
            grid=grid,
            in_specs=[
                # Weight: constant index_map -> stays resident in VMEM across all steps.
                pl.BlockSpec((C_out, C_in), lambda b, j: (0, 0)),
                # Input tile in native NCL layout (no wrapper transposes).
                pl.BlockSpec((B_T, C_in, T_L), lambda b, j: (b, 0, j)),
            ],
            # Output tile written directly in (N, C_out, L) layout.
            out_specs=pl.BlockSpec((B_T, C_out, T_L), lambda b, j: (b, 0, j)),
        ),
        compiler_params=pltpu.CompilerParams(
            # Independent output tiles on both axes -> shardable across TCs (v7x).
            dimension_semantics=("parallel", "parallel"),
            vmem_limit_bytes=vmem_limit,
        ),
        cost_estimate=cost,
    )(weight, x)


if __name__ == "__main__":
    key = jax.random.PRNGKey(0)
    k1, k2, k3, k4, k5, k6 = jax.random.split(key, 6)

    # Module-implied small shapes: ZeroConvBlock(input=4, output=8) on (N, C_in, L).
    N, C_in, C_out, L = 2, 4, 8, 16
    x = jax.random.normal(k1, (N, C_in, L), dtype=jnp.float32)

    # nn.init.constant_(conv.weight, 0): zero-initialized (C_out, C_in, 1) weight.
    w_zero = jnp.zeros((C_out, C_in, 1), dtype=jnp.float32)
    out = jax.block_until_ready(zero_conv_block(x, w_zero))
    assert out.shape == (N, C_out, L)
    assert jnp.allclose(out, jnp.zeros_like(out))

    # The conv is only *initialized* to zero (ControlNet-style); the forward path is a
    # general 1x1 conv, so also validate with non-zero weights against an einsum ref.
    w_rand = jax.random.normal(k2, (C_out, C_in, 1), dtype=jnp.float32)
    out_r = jax.block_until_ready(zero_conv_block(x, w_rand))
    ref_r = jnp.einsum("ock,ncl->nol", w_rand, x)
    assert jnp.allclose(out_r, ref_r, atol=1e-5, rtol=1e-5)

    # Batch-ganged grid with an uneven trailing batch tile (VPU path, grid=(2,1)).
    # Integer-valued data -> exact arithmetic, precision-independent comparison.
    xb = jax.random.randint(k3, (3, C_in, L), -3, 4).astype(jnp.float32)
    wb = jax.random.randint(k4, (C_out, C_in), -3, 4).astype(jnp.float32)
    out_b = jax.block_until_ready(zero_conv_block(xb, wb, step_bytes=16 * 1024))
    ref_b = jnp.einsum("oc,ncl->nol", wb, xb)
    assert jnp.allclose(out_b, ref_b, atol=1e-6)

    # MXU path with length tiling and an uneven trailing lane tile (grid=(1,2)).
    Ci2, Co2, L2 = 32, 48, 200
    xm = jax.random.randint(k5, (1, Ci2, L2), -2, 3).astype(jnp.float32)
    wm = jax.random.randint(k6, (Co2, Ci2), -2, 3).astype(jnp.float32)
    out_m = jax.block_until_ready(zero_conv_block(xm, wm, step_bytes=64 * 1024))
    ref_m = jnp.einsum("oc,ncl->nol", wm, xm)
    assert jnp.allclose(out_m, ref_m, atol=1e-6)

    print("KERNEL_OK")
</pallas_src>

<mosaic_0001>
module attributes {stable_mosaic.version = 11 : i64} {
  func.func @kernel(%arg0: i32, %arg1: i32, %arg2: memref<8x4xf32, #tpu.memory_space<vmem>>, %arg3: memref<2x4x16xf32, #tpu.memory_space<vmem>>, %arg4: memref<2x8x16xf32, #tpu.memory_space<vmem>>) attributes {dimension_semantics = [#tpu.dimension_semantics<parallel>, #tpu.dimension_semantics<parallel>], iteration_bounds = array<i64: 1, 1>, scalar_prefetch = 0 : i64, scratch_operands = 0 : i64, tpu.core_type = #tpu.core_type<tc>, window_params = [{pipeline_mode = #tpu.pipeline_mode<synchronous>, transform_indices = @transform_0, window_bounds = array<i64: 8, 4>}, {transform_indices = @transform_1, window_bounds = array<i64: 2, 4, 16>}, {transform_indices = @transform_2, window_bounds = array<i64: 2, 8, 16>}]} {
    %c0 = arith.constant 0 : index
    %c0_0 = arith.constant 0 : index
    %0 = vector.load %arg2[%c0, %c0_0] : memref<8x4xf32, #tpu.memory_space<vmem>>, vector<8x4xf32>
    %1 = vector.extract_strided_slice %0 {offsets = [0, 0], sizes = [8, 1], strides = [1, 1]} : vector<8x4xf32> to vector<8x1xf32>
    %2 = vector.shape_cast %1 : vector<8x1xf32> to vector<1x8x1xf32>
    %c0_1 = arith.constant 0 : index
    %c0_2 = arith.constant 0 : index
    %c0_3 = arith.constant 0 : index
    %3 = vector.load %arg3[%c0_1, %c0_2, %c0_3] : memref<2x4x16xf32, #tpu.memory_space<vmem>>, vector<2x1x16xf32>
    %4 = vector.broadcast %2 : vector<1x8x1xf32> to vector<2x8x16xf32>
    %5 = vector.broadcast %3 : vector<2x1x16xf32> to vector<2x8x16xf32>
    %6 = arith.mulf %4, %5 : vector<2x8x16xf32>
    %7 = vector.extract_strided_slice %0 {offsets = [0, 1], sizes = [8, 1], strides = [1, 1]} : vector<8x4xf32> to vector<8x1xf32>
    %8 = vector.shape_cast %7 : vector<8x1xf32> to vector<1x8x1xf32>
    %c0_4 = arith.constant 0 : index
    %c1 = arith.constant 1 : index
    %c0_5 = arith.constant 0 : index
    %9 = vector.load %arg3[%c0_4, %c1, %c0_5] : memref<2x4x16xf32, #tpu.memory_space<vmem>>, vector<2x1x16xf32>
    %10 = vector.broadcast %8 : vector<1x8x1xf32> to vector<2x8x16xf32>
    %11 = vector.broadcast %9 : vector<2x1x16xf32> to vector<2x8x16xf32>
    %12 = arith.mulf %10, %11 : vector<2x8x16xf32>
    %13 = arith.addf %6, %12 : vector<2x8x16xf32>
    %14 = vector.extract_strided_slice %0 {offsets = [0, 2], sizes = [8, 1], strides = [1, 1]} : vector<8x4xf32> to vector<8x1xf32>
    %15 = vector.shape_cast %14 : vector<8x1xf32> to vector<1x8x1xf32>
    %c0_6 = arith.constant 0 : index
    %c2 = arith.constant 2 : index
    %c0_7 = arith.constant 0 : index
    %16 = vector.load %arg3[%c0_6, %c2, %c0_7] : memref<2x4x16xf32, #tpu.memory_space<vmem>>, vector<2x1x16xf32>
    %17 = vector.broadcast %15 : vector<1x8x1xf32> to vector<2x8x16xf32>
    %18 = vector.broadcast %16 : vector<2x1x16xf32> to vector<2x8x16xf32>
    %19 = arith.mulf %17, %18 : vector<2x8x16xf32>
    %20 = arith.addf %13, %19 : vector<2x8x16xf32>
    %21 = vector.extract_strided_slice %0 {offsets = [0, 3], sizes = [8, 1], strides = [1, 1]} : vector<8x4xf32> to vector<8x1xf32>
    %22 = vector.shape_cast %21 : vector<8x1xf32> to vector<1x8x1xf32>
    %c0_8 = arith.constant 0 : index
    %c3 = arith.constant 3 : index
    %c0_9 = arith.constant 0 : index
    %23 = vector.load %arg3[%c0_8, %c3, %c0_9] : memref<2x4x16xf32, #tpu.memory_space<vmem>>, vector<2x1x16xf32>
    %24 = vector.broadcast %22 : vector<1x8x1xf32> to vector<2x8x16xf32>
    %25 = vector.broadcast %23 : vector<2x1x16xf32> to vector<2x8x16xf32>
    %26 = arith.mulf %24, %25 : vector<2x8x16xf32>
    %27 = arith.addf %20, %26 : vector<2x8x16xf32>
    %c0_10 = arith.constant 0 : index
    %c0_11 = arith.constant 0 : index
    %c0_12 = arith.constant 0 : index
    %28 = vector.load %arg4[%c0_10, %c0_11, %c0_12] : memref<2x8x16xf32, #tpu.memory_space<vmem>>, vector<2x8x16xf32>
    tpu.vector_store %arg4[%c0_10, %c0_11, %c0_12], %27 {strides = array<i32>} : memref<2x8x16xf32, #tpu.memory_space<vmem>>, vector<2x8x16xf32>,
    return
  }
  func.func @transform_0(%arg0: i32, %arg1: i32) -> (i32, i32) {
    %c0_i32 = arith.constant 0 : i32
    %c0_i32_0 = arith.constant 0 : i32
    %c0_i32_1 = arith.constant 0 : i32
    return %c0_i32, %c0_i32_0 : i32, i32
  }
  func.func @transform_1(%arg0: i32, %arg1: i32) -> (i32, i32, i32) {
    %c0_i32 = arith.constant 0 : i32
    %c0_i32_0 = arith.constant 0 : i32
    return %arg0, %c0_i32, %arg1 : i32, i32, i32
  }
  func.func @transform_2(%arg0: i32, %arg1: i32) -> (i32, i32, i32) {
    %c0_i32 = arith.constant 0 : i32
    %c0_i32_0 = arith.constant 0 : i32
    return %arg0, %c0_i32, %arg1 : i32, i32, i32
  }
}

</mosaic_0001>

<llo_original>
// kernel: zero_conv_block.1
$region0: #{zero_conv_block.1}
  #allocation0 [shape = 'u32[]', space=smem, size = 0x4, offset = 0x4, fixed_abs, tag = 'smem constant byte address 0x4 - core index']
  #allocation1 [shape = 'u32[144,128]{1,0:T(1,128)}', space=vmem, size = 0x12000, scoped, tag = 'internal scratch']
  %s0 = inlined_call_operand.vmem [shape: f32[8,4], index: 0, kind: input, shape index: {}]
  %s1 = inlined_call_operand.vmem [shape: f32[2,4,16], index: 1, kind: input, shape index: {}]
  %s2 = inlined_call_operand.hbm [shape: f32[2,8,16], index: 2, kind: output, shape index: {}]
  %s3 = sld [smem:[#allocation0]]
  $region18: #{zero_conv_block.1} parent=0
    _
  %s5 = ssub.s32 1, %s3
  %s6 = scalar_select 0, %s5, %s3
  $region1: #{zero_conv_block.1} parent=0
    #allocation2 [shape = 'u8[8192]{0}', space=vmem, size = 0x2000, scoped, tag = 'output window, operand 0, single buffered']
    #allocation3 [shape = 's32[1]{0}', space=sflag, size = 0x4, scoped, tag = 'scoped memory for zero_conv_block.1']
    %7 = vsyncpa [#allocation3], 0
    // Predicated region
    $region2: #{zero_conv_block.1} parent=1 // pred_check
      _
    $region3: #{zero_conv_block.1} parent=1 // pred_check_branch
      %9 = sbr.rel (0) target = $region5
    $region4: #{zero_conv_block.1} parent=1 // pred_region
      _
    $region5: #{zero_conv_block.1} parent=1 // pred_fallthru
      _
    // Predicated region
    $region6: #{zero_conv_block.1} parent=1 // pred_check
      _
    $region7: #{zero_conv_block.1} parent=1 // pred_check_branch
      %11 = sbr.rel (0) target = $region9
    $region8: #{zero_conv_block.1} parent=1 // pred_region
      _
    $region9: #{zero_conv_block.1} parent=1 // pred_fallthru
      _
    %v12 = vld [vmem:[%s0] sm:$0xff]
    %v13 = vld [vmem:[%s1] sm:$0x1]
    %v14 = vld [vmem:[%s1 + $0x4] sm:$0x1]
    %16 = vset.pattern.permute.xlu0 0
    %17 = vperm.xlu0 %16, %v12
    %v18 = vpop.permute.xlu0 %17
    %v20 = vlaneseq
    %v21 = vshrl.u32 %v20, 7
    %v22 = vsub.s32 0, %v21
    %v23 = vrot.slane %v13, %v22
    %v24 = vlaneseq
    %v25 = vshrl.u32 %v24, 7
    %v26 = vsub.s32 0, %v25
    %v27 = vrot.slane %v14, %v26
    %v28 = vmul.f32 %v18, %v23
    %v29 = vmul.f32 %v18, %v27
    %v30 = vld [vmem:[%s1 + $0x1] sm:$0x1]
    %v31 = vld [vmem:[%s1 + $0x5] sm:$0x1]
    %32 = vset.pattern.permute.xlu0 1
    %33 = vperm.xlu0 %32, %v12
    %v34 = vpop.permute.xlu0 %33
    %v36 = vlaneseq
    %v37 = vshrl.u32 %v36, 7
    %v38 = vsub.s32 0, %v37
    %v39 = vrot.slane %v30, %v38
    %v40 = vlaneseq
    %v41 = vshrl.u32 %v40, 7
    %v42 = vsub.s32 0, %v41
    %v43 = vrot.slane %v31, %v42
    %v44 = vmul.f32 %v34, %v39
    %v45 = vmul.f32 %v34, %v43
    %v46 = vadd.f32 %v28, %v44
    %v47 = vadd.f32 %v29, %v45
    %v48 = vld [vmem:[%s1 + $0x2] sm:$0x1]
    %v49 = vld [vmem:[%s1 + $0x6] sm:$0x1]
    %50 = vset.pattern.permute.xlu0 2
    %51 = vperm.xlu0 %50, %v12
    %v52 = vpop.permute.xlu0 %51
    %v54 = vlaneseq
    %v55 = vshrl.u32 %v54, 7
    %v56 = vsub.s32 0, %v55
    %v57 = vrot.slane %v48, %v56
    %v58 = vlaneseq
    %v59 = vshrl.u32 %v58, 7
    %v60 = vsub.s32 0, %v59
    %v61 = vrot.slane %v49, %v60
    %v62 = vmul.f32 %v52, %v57
    %v63 = vmul.f32 %v52, %v61
    %v64 = vadd.f32 %v46, %v62
    %v65 = vadd.f32 %v47, %v63
    %v66 = vld [vmem:[%s1 + $0x3] sm:$0x1]
    %v67 = vld [vmem:[%s1 + $0x7] sm:$0x1]
    %68 = vset.pattern.permute.xlu0 3
    %69 = vperm.xlu0 %68, %v12
    %v70 = vpop.permute.xlu0 %69
    %v72 = vlaneseq
    %v73 = vshrl.u32 %v72, 7
    %v74 = vsub.s32 0, %v73
    %v75 = vrot.slane %v66, %v74
    %v76 = vlaneseq
    %v77 = vshrl.u32 %v76, 7
    %v78 = vsub.s32 0, %v77
    %v79 = vrot.slane %v67, %v78
    %v80 = vmul.f32 %v70, %v75
    %v81 = vmul.f32 %v70, %v79
    %v82 = vadd.f32 %v64, %v80
    %v83 = vadd.f32 %v65, %v81
    %vm84 = vcmask 130048
    %85 = vst.msk [vmem:[#allocation2] sm:$0xff] %vm84, %v82
    %86 = vst.msk [vmem:[#allocation2 + $0x8] sm:$0xff] %vm84, %v83
    // Predicated region
    $region10: #{zero_conv_block.1} parent=1 // pred_check
      _
    $region11: #{zero_conv_block.1} parent=1 // pred_check_branch
      %88 = sbr.rel (0) target = $region13
    $region12: #{zero_conv_block.1} parent=1 // pred_region
      %s90 = ssub.s32 256, 256
      %91 = vsyncadd [#allocation3], %s90
      %s92 = sshll.u32 [#allocation2], 4
      %s93 = int_to_ptr.vmem [resolvable:$true] %s92
      %98 = dma.vmem_to_hbm [thread:$0]  %s93, 256, %s2, [#allocation3], 128, 128, 8
    $region13: #{zero_conv_block.1} parent=1 // pred_fallthru
      _
    // Predicated region
    $region14: #{zero_conv_block.1} parent=1 // pred_check
      _
    $region15: #{zero_conv_block.1} parent=1 // pred_check_branch
      %100 = sbr.rel (0) target = $region17
    $region16: #{zero_conv_block.1} parent=1 // pred_region
      %101 = dma.done [#allocation3], 256
    $region17: #{zero_conv_block.1} parent=1 // pred_fallthru
      _
    %102 = vsyncpa [#allocation3], 1

</llo_original>
